<compile_context>
chip_gen: v5e
topology: v5e:2x2
jax: 0.10.0
libtpu: 0.0.40
codegen_flags: <defaults>
</compile_context>

<pallas_src>
import jax
import jax.numpy as jnp
from jax.experimental import pallas as pl
from jax.experimental.pallas import tpu as pltpu

SUB = 8      # sublane granularity
LANE = 128   # lane granularity


def _pad_to(n, m):
    return ((n + m - 1) // m) * m


def mlp_kernel(x_ref, w1_ref, w2_ref, b2_ref, o_ref):
    # fc1 (+ folded b1 via the constant-1 column of x) on the MXU, ReLU on the VPU.
    h = jnp.dot(x_ref[...], w1_ref[...], preferred_element_type=jnp.float32)  # (Bp, H)
    h = jnp.maximum(h, 0.0)
    # fc2 with Dout == 1: VPU multiply + lane reduction (no second MXU matmul).
    y = jnp.sum(h * w2_ref[...], axis=-1, keepdims=True) + b2_ref[0, 0]       # (Bp, 1)
    # Lane-dense writeback: broadcast across the 128-wide output tile; column 0 is
    # the real result and is sliced out in the wrapper.
    o_ref[...] = jnp.broadcast_to(y, o_ref.shape)


def prepare_params(w1, b1, w2, b2):
    """Static (per-model, not per-call) weight preparation.

    w1: (Din, H), b1: (H,), w2: (H, Dout=1), b2: (1,)
    Returns:
      w1a: (Da, H) with b1 folded in as an extra row (Da = pad(Din+1, 8)).
      w2r: (1, H) row form of w2.
      b2s: (1, 1) scalar for SMEM.
    """
    Din, H = w1.shape
    Da = max(SUB, _pad_to(Din + 1, SUB))
    w1a = jnp.zeros((Da, H), jnp.float32)
    w1a = w1a.at[:Din, :].set(w1)
    w1a = w1a.at[Din, :].set(b1)          # bias row, hit by the constant-1 column of x
    w2r = jnp.asarray(w2, jnp.float32).T  # (1, H)
    b2s = jnp.asarray(b2, jnp.float32).reshape(1, 1)
    return w1a, w2r, b2s


def fusion_model3(x, w1a, w2r, b2s):
    """Forward pass: relu(x @ w1 + b1) @ w2 + b2, fused in one Pallas kernel.

    x:   (B, Din) float32
    w1a: (Da, H)  float32 (bias-folded, from prepare_params)
    w2r: (1, H)   float32
    b2s: (1, 1)   float32
    returns (B, 1) float32
    """
    B, Din = x.shape
    Da, H = w1a.shape
    Bp = max(SUB, _pad_to(B, SUB))

    # Augment x with the constant-1 bias column; zero-pad rows / spare columns.
    xa = jnp.zeros((Bp, Da), jnp.float32)
    xa = xa.at[:B, :Din].set(x)
    xa = xa.at[:B, Din].set(1.0)

    out = pl.pallas_call(
        mlp_kernel,
        out_shape=jax.ShapeDtypeStruct((Bp, LANE), jnp.float32),
        in_specs=[
            pl.BlockSpec(memory_space=pltpu.MemorySpace.VMEM),   # xa   (Bp, Da)
            pl.BlockSpec(memory_space=pltpu.MemorySpace.VMEM),   # w1a  (Da, H)
            pl.BlockSpec(memory_space=pltpu.MemorySpace.VMEM),   # w2r  (1, H)
            pl.BlockSpec(memory_space=pltpu.MemorySpace.SMEM),   # b2s  (1, 1)
        ],
        out_specs=pl.BlockSpec(memory_space=pltpu.MemorySpace.VMEM),
    )(xa, w1a, w2r, b2s)

    return out[:B, :1]


def reference(x, w1, b1, w2, b2):
    h = jnp.maximum(x @ w1 + b1, 0.0)
    return h @ w2 + b2


if __name__ == "__main__":
    key = jax.random.PRNGKey(0)
    k_x, k_w1, k_b1, k_w2, k_b2 = jax.random.split(key, 5)

    B, DIN, HID, DOUT = 8, 3, 8, 1

    # Deterministic init matching nn.Linear's U(-1/sqrt(fan_in), +1/sqrt(fan_in)).
    lim1 = 1.0 / jnp.sqrt(float(DIN))
    lim2 = 1.0 / jnp.sqrt(float(HID))
    w1 = jax.random.uniform(k_w1, (DIN, HID), jnp.float32, -lim1, lim1)
    b1 = jax.random.uniform(k_b1, (HID,), jnp.float32, -lim1, lim1)
    w2 = jax.random.uniform(k_w2, (HID, DOUT), jnp.float32, -lim2, lim2)
    b2 = jax.random.uniform(k_b2, (DOUT,), jnp.float32, -lim2, lim2)

    x = jax.random.normal(k_x, (B, DIN), jnp.float32)

    # Hoisted, one-time weight prep.
    w1a, w2r, b2s = prepare_params(w1, b1, w2, b2)

    out = fusion_model3(x, w1a, w2r, b2s)
    out = jax.block_until_ready(out)

    ref = reference(x, w1, b1, w2, b2)
    assert out.shape == (B, DOUT), out.shape
    assert jnp.allclose(out, ref, atol=1e-5, rtol=1e-5), (out, ref)

    print("KERNEL_OK")
</pallas_src>

<mosaic_0001>
module attributes {stable_mosaic.version = 11 : i64} {
  func.func @mlp_kernel(%arg0: memref<8x8xf32, #tpu.memory_space<vmem>>, %arg1: memref<8x8xf32, #tpu.memory_space<vmem>>, %arg2: memref<1x8xf32, #tpu.memory_space<vmem>>, %arg3: memref<1x1xf32, #tpu.memory_space<smem>>, %arg4: memref<8x128xf32, #tpu.memory_space<vmem>>) attributes {dimension_semantics = [], scalar_prefetch = 0 : i64, scratch_operands = 0 : i64, tpu.core_type = #tpu.core_type<tc>} {
    %c0 = arith.constant 0 : index
    %c0_0 = arith.constant 0 : index
    %0 = vector.load %arg0[%c0, %c0_0] : memref<8x8xf32, #tpu.memory_space<vmem>>, vector<8x8xf32>
    %c0_1 = arith.constant 0 : index
    %c0_2 = arith.constant 0 : index
    %1 = vector.load %arg1[%c0_1, %c0_2] : memref<8x8xf32, #tpu.memory_space<vmem>>, vector<8x8xf32>
    %cst = arith.constant dense<0.000000e+00> : vector<8x8xf32>
    %2 = tpu.matmul %0, %1, %cst {dimension_numbers = #tpu.dot_dimension_numbers<[1], [0], [0], [1], [0, 0, 1, 1], [], []>} : vector<8x8xf32>, vector<8x8xf32>, vector<8x8xf32> -> vector<8x8xf32>
    %cst_3 = arith.constant 0.000000e+00 : f32
    %3 = vector.broadcast %cst_3 : f32 to vector<8x8xf32>
    %4 = arith.maximumf %2, %3 : vector<8x8xf32>
    %c0_4 = arith.constant 0 : index
    %c0_5 = arith.constant 0 : index
    %5 = vector.load %arg2[%c0_4, %c0_5] : memref<1x8xf32, #tpu.memory_space<vmem>>, vector<1x8xf32>
    %6 = vector.broadcast %5 : vector<1x8xf32> to vector<8x8xf32>
    %7 = arith.mulf %4, %6 : vector<8x8xf32>
    %cst_6 = arith.constant dense<0.000000e+00> : vector<8xf32>
    %8 = vector.multi_reduction <add>, %7, %cst_6 [1] : vector<8x8xf32> to vector<8xf32>
    %9 = vector.shape_cast %8 : vector<8xf32> to vector<8x1xf32>
    %c0_7 = arith.constant 0 : index
    %c0_8 = arith.constant 0 : index
    %10 = memref.load %arg3[%c0_7, %c0_8] : memref<1x1xf32, #tpu.memory_space<smem>>
    %11 = vector.broadcast %10 : f32 to vector<8x1xf32>
    %12 = arith.addf %9, %11 : vector<8x1xf32>
    %13 = vector.shape_cast %12 : vector<8x1xf32> to vector<8x1xf32>
    %14 = vector.broadcast %13 : vector<8x1xf32> to vector<8x128xf32>
    %c0_9 = arith.constant 0 : index
    %c0_10 = arith.constant 0 : index
    %15 = vector.load %arg4[%c0_9, %c0_10] : memref<8x128xf32, #tpu.memory_space<vmem>>, vector<8x128xf32>
    tpu.vector_store %arg4[%c0_9, %c0_10], %14 {strides = array<i32>} : memref<8x128xf32, #tpu.memory_space<vmem>>, vector<8x128xf32>,
    return
  }
}

</mosaic_0001>

<llo_original>
// kernel: tpu_custom_call.1
$region0: #{tpu_custom_call.1}
  #allocation0 [shape = 'u32[]', space=smem, size = 0x4, offset = 0x4, fixed_abs, tag = 'smem constant byte address 0x4 - core index']
  #allocation1 [shape = 'u32[72,128]{1,0:T(1,128)}', space=vmem, size = 0x9000, scoped, tag = 'internal scratch']
  #allocation2 [shape = 'f32[1,1]{1,0:T(1,128)S(6)}', space=smem, size = 0x200, scoped, tag = 'scoped memory for tpu_custom_call.1']
  %s0 = inlined_call_operand.hbm [shape: f32[8,8], index: 0, kind: input, shape index: {}]
  %s1 = inlined_call_operand.hbm [shape: f32[8,8], index: 1, kind: input, shape index: {}]
  %s2 = inlined_call_operand.vmem [shape: f32[1,8], index: 2, kind: input, shape index: {}]
  %s3 = inlined_call_operand.<no memory space> [shape: f32[1,1], index: 3, kind: input, shape index: {}]
  %s4 = inlined_call_operand.hbm [shape: f32[8,128], index: 4, kind: output, shape index: {}]
  %s5 = sld [smem:[#allocation0]]
  $region34: #{tpu_custom_call.1} parent=0
    _
  %s7 = ssub.s32 1, %s5
  %s8 = scalar_select 0, %s7, %s5
  %9 = sst [smem:[#allocation2]] %s3
  $region1: #{tpu_custom_call.1} parent=0
    #allocation3 [shape = 'u8[4096]{0}', space=vmem, size = 0x1000, scoped, tag = 'input window, operand 0, single buffered']
    #allocation4 [shape = 's32[1]{0}', space=sflag, size = 0x4, scoped, tag = 'scoped memory for tpu_custom_call.1']
    #allocation5 [shape = 's32[1]{0}', space=sflag, size = 0x4, scoped, tag = 'scoped memory for tpu_custom_call.1']
    #allocation6 [shape = 'u8[4096]{0}', space=vmem, size = 0x1000, scoped, tag = 'input window, operand 1, single buffered']
    #allocation7 [shape = 's32[1]{0}', space=sflag, size = 0x4, scoped, tag = 'scoped memory for tpu_custom_call.1']
    #allocation8 [shape = 'u8[4096]{0}', space=vmem, size = 0x1000, scoped, tag = 'output window, operand 0, single buffered']
    %10 = vsyncpa [#allocation4], 0
    %11 = vsyncpa [#allocation7], 0
    %12 = vsyncpa [#allocation5], 0
    // Predicated region
    $region2: #{tpu_custom_call.1} parent=1 // pred_check
      _
    $region3: #{tpu_custom_call.1} parent=1 // pred_check_branch
      %14 = sbr.rel (0) target = $region5
    $region4: #{tpu_custom_call.1} parent=1 // pred_region
      %16 = vsyncadd [#allocation4], 0
      %s18 = sshll.u32 %s0, 4
      %s19 = int_to_ptr.hbm [resolvable:$true] %s18
      %s20 = sshll.u32 [#allocation3], 4
      %s21 = int_to_ptr.vmem [resolvable:$true] %s20
      %23 = dma.hbm_to_vmem [thread:$0]  %s19, 128, %s21, [#allocation4]
    $region5: #{tpu_custom_call.1} parent=1 // pred_fallthru
      _
    // Predicated region
    $region6: #{tpu_custom_call.1} parent=1 // pred_check
      _
    $region7: #{tpu_custom_call.1} parent=1 // pred_check_branch
      %25 = sbr.rel (0) target = $region9
    $region8: #{tpu_custom_call.1} parent=1 // pred_region
      %27 = vsyncadd [#allocation7], 0
      %s29 = sshll.u32 %s1, 4
      %s30 = int_to_ptr.hbm [resolvable:$true] %s29
      %s31 = sshll.u32 [#allocation6], 4
      %s32 = int_to_ptr.vmem [resolvable:$true] %s31
      %34 = dma.hbm_to_vmem [thread:$0]  %s30, 128, %s32, [#allocation7]
    $region9: #{tpu_custom_call.1} parent=1 // pred_fallthru
      _
    // Predicated region
    $region10: #{tpu_custom_call.1} parent=1 // pred_check
      _
    $region11: #{tpu_custom_call.1} parent=1 // pred_check_branch
      %36 = sbr.rel (0) target = $region13
    $region12: #{tpu_custom_call.1} parent=1 // pred_region
      _
    $region13: #{tpu_custom_call.1} parent=1 // pred_fallthru
      _
    // Predicated region
    $region14: #{tpu_custom_call.1} parent=1 // pred_check
      _
    $region15: #{tpu_custom_call.1} parent=1 // pred_check_branch
      %38 = sbr.rel (0) target = $region17
    $region16: #{tpu_custom_call.1} parent=1 // pred_region
      _
    $region17: #{tpu_custom_call.1} parent=1 // pred_fallthru
      _
    // Predicated region
    $region18: #{tpu_custom_call.1} parent=1 // pred_check
      _
    $region19: #{tpu_custom_call.1} parent=1 // pred_check_branch
      %40 = sbr.rel (0) target = $region21
    $region20: #{tpu_custom_call.1} parent=1 // pred_region
      %42 = dma.done [#allocation4], 128
    $region21: #{tpu_custom_call.1} parent=1 // pred_fallthru
      _
    // Predicated region
    $region22: #{tpu_custom_call.1} parent=1 // pred_check
      _
    $region23: #{tpu_custom_call.1} parent=1 // pred_check_branch
      %44 = sbr.rel (0) target = $region25
    $region24: #{tpu_custom_call.1} parent=1 // pred_region
      %46 = dma.done [#allocation7], 128
    $region25: #{tpu_custom_call.1} parent=1 // pred_fallthru
      _
    %v47 = vld [vmem:[#allocation3] sm:$0xff]
    %v48 = vld [vmem:[#allocation6] sm:$0xff]
    %vm49 = vcmask 64512
    %v51 = vsel %vm49, %v47, 0
    %53 = vmatpush.msra.mxu0 0.0
    %54 = vmatpush.msra.mxu0 0.0
    %55 = vmatpush.msra.mxu0 0.0
    %56 = vmatpush.msra.mxu0 0.0
    %57 = vmatpush.msra.mxu0 0.0
    %58 = vmatpush.msra.mxu0 0.0
    %59 = vmatpush.msra.mxu0 0.0
    %60 = vmatpush.msra.mxu0 0.0
    %61 = vmatpush.msra.mxu0 0.0
    %62 = vmatpush.msra.mxu0 0.0
    %63 = vmatpush.msra.mxu0 0.0
    %64 = vmatpush.msra.mxu0 0.0
    %65 = vmatpush.msra.mxu0 0.0
    %66 = vmatpush.msra.mxu0 0.0
    %67 = vmatpush.msra.mxu0 0.0
    %68 = vmatpush.msra.mxu0 %v48
    %69 = vmatmul.f32.gmra.mxu0 %v51
    %v70 = vpop.f32.mrf.mxu0
    %v71 = vadd.f32 0.0, %v70
    %72 = vdwg.mxu0
    %v73 = vmax.f32 %v71, 0.0
    %v74 = vld [vmem:[%s2] sm:$0x1]
    %v76 = vperm.slane %v74, 0
    %v78 = vmul.f32 %v73, %v76
    %v79 = vsel %vm49, %v78, 0.0
    %80 = vadd.xlane.f32.xlu0 %v79
    %v81 = vpop.xlane.xlu0 %80
    %s82 = sld [smem:[#allocation2]]
    %v83 = vstv %s82
    %v84 = vadd.f32 %v81, %v83
    %85 = vst [vmem:[#allocation8] sm:$0xff] %v84
    // Predicated region
    $region26: #{tpu_custom_call.1} parent=1 // pred_check
      _
    $region27: #{tpu_custom_call.1} parent=1 // pred_check_branch
      %87 = sbr.rel (0) target = $region29
    $region28: #{tpu_custom_call.1} parent=1 // pred_region
      %89 = vsyncadd [#allocation5], 0
      %s91 = sshll.u32 [#allocation8], 4
      %s92 = int_to_ptr.vmem [resolvable:$true] %s91
      %s93 = sshll.u32 %s4, 4
      %s94 = int_to_ptr.hbm [resolvable:$true] %s93
      %96 = dma.vmem_to_hbm [thread:$0]  %s92, 128, %s94, [#allocation5]
    $region29: #{tpu_custom_call.1} parent=1 // pred_fallthru
      _
    // Predicated region
    $region30: #{tpu_custom_call.1} parent=1 // pred_check
      _
    $region31: #{tpu_custom_call.1} parent=1 // pred_check_branch
      %98 = sbr.rel (0) target = $region33
    $region32: #{tpu_custom_call.1} parent=1 // pred_region
      %100 = dma.done [#allocation5], 128
    $region33: #{tpu_custom_call.1} parent=1 // pred_fallthru
      _
    %101 = vsyncpa [#allocation4], 1
    %102 = vsyncpa [#allocation7], 1
    %103 = vsyncpa [#allocation5], 1

</llo_original>
